<compile_context>
chip_gen: v7x
topology: tpu7x:2x2x1
jax: 0.10.0
libtpu: 0.0.40
codegen_flags: <defaults>
</compile_context>

<pallas_src>
import math

import jax
import jax.numpy as jnp
from jax.experimental import pallas as pl
from jax.experimental.pallas import tpu as pltpu


_VMEM_LIMIT = 32 * 1024 * 1024   # explicit scoped-VMEM budget; safe on v5e/v6e/v7x
_BOXP = 128                      # lane width of the packed box output slabs


# ---------------------------------------------------------------------------
# helpers
# ---------------------------------------------------------------------------
def _round_up(x, m):
    return ((x + m - 1) // m) * m


def _pick_hw_tile(hw, max_tile=512):
    """HW tile: multiple of 128, <= max_tile; wrapper pads HW to a tile multiple."""
    if hw <= max_tile:
        return _round_up(hw, 128)
    return max_tile


def _pick_m_tile(m, max_tile=512):
    if m <= max_tile:
        return _round_up(max(m, 8), 8)
    return max_tile


def _inverse_sigmoid(x, eps=1e-5):
    x = jnp.clip(x, 0.0, 1.0)
    x1 = jnp.maximum(x, eps)
    x2 = jnp.maximum(1.0 - x, eps)
    return jnp.log(x1 / x2)


# ---------------------------------------------------------------------------
# Kernel set 1: input_proj = 1x1 conv (channel matmul) + GroupNorm(num_groups)
#   Pass 1: single MXU projection, bf16 proj slab to HBM + stats accumulation.
#   Pass 2: pure VPU affine over the bf16 slab.  NCHW layout end-to-end.
# ---------------------------------------------------------------------------
def _proj_stats_kernel(x_ref, wt_ref, proj_ref, stats_ref):
    """Project one (Cin, tHW) tile once, emit bf16 proj, accumulate sum/sumsq.

    Grid is (hw_split, B, hw_tiles).  The stats block index depends only on the
    two parallel axes and is revisited along the trailing 'arbitrary' axis --
    this must stay 'arbitrary' for the accumulation to be correct (the v7x
    two-core split uses independent partial-stats blocks instead)."""
    ti = pl.program_id(2)
    proj = jnp.dot(wt_ref[...], x_ref[0], preferred_element_type=jnp.float32)  # (D, tHW)
    proj_ref[0] = proj.astype(proj_ref.dtype)
    s = jnp.sum(proj, axis=1, keepdims=True)                                   # (D, 1)
    ss = jnp.sum(proj * proj, axis=1, keepdims=True)                           # (D, 1)
    contrib = jnp.concatenate([s, ss], axis=1)                                 # (D, 2)

    @pl.when(ti == 0)
    def _():
        stats_ref[0, 0] = contrib

    @pl.when(ti > 0)
    def _():
        stats_ref[0, 0] = stats_ref[0, 0] + contrib


def _proj_norm_kernel(proj_ref, ss_ref, o_ref):
    """Pure VPU affine over the bf16 projection slab (no x re-read, no matmul)."""
    proj = proj_ref[0].astype(jnp.float32)     # (D, tHW)
    scale = ss_ref[0, :, 0:1]                  # (D, 1)
    shift = ss_ref[0, :, 1:2]
    o_ref[0] = (proj * scale + shift).astype(o_ref.dtype)


def input_proj_groupnorm(x_nchw, w, b, gamma, beta, num_groups=32, eps=1e-5,
                         max_hw_tile=512, out_dtype=jnp.float32):
    """1x1 conv + GroupNorm, NCHW in / NCHW out, no HBM-side transposes.

    Set out_dtype=jnp.bfloat16 if the downstream transformer consumes bf16 to
    halve the writeback stream (this kernel is HBM-bound on all generations)."""
    B, Cin, H, W = x_nchw.shape
    D = w.shape[1]
    HW = H * W
    thw = _pick_hw_tile(HW, max_hw_tile)
    HWp = _round_up(HW, thw)
    n_t = HWp // thw
    # v7x megacore: split the HW tiles into two independent partial-stats halves
    # (summed in XLA) so both TensorCores are busy even when B <= 2.
    n_split = 2 if (n_t >= 2 and n_t % 2 == 0) else 1
    n_ts = n_t // n_split

    # bf16 DMA for x (the cast fuses with the reshape/pad; ideally the backbone
    # already emits bf16).  GroupNorm rescales, so bf16 conv operands are safe.
    x = x_nchw.reshape(B, Cin, HW).astype(jnp.bfloat16)
    if HWp != HW:
        x = jnp.pad(x, ((0, 0), (0, 0), (0, HWp - HW)))
    wt = w.T.astype(jnp.bfloat16)                                       # (D, Cin)

    # NOTE: at production scale, mark the constant weight spec with
    # pipeline_mode=pl.Buffered(1) to avoid double-buffering it in VMEM.
    proj, stats = pl.pallas_call(
        _proj_stats_kernel,
        out_shape=(jax.ShapeDtypeStruct((B, D, HWp), jnp.bfloat16),
                   jax.ShapeDtypeStruct((B, n_split, D, 2), jnp.float32)),
        grid=(n_split, B, n_ts),
        in_specs=[
            pl.BlockSpec((1, Cin, thw), lambda hi, bi, ti: (bi, 0, hi * n_ts + ti)),
            pl.BlockSpec((D, Cin), lambda hi, bi, ti: (0, 0)),
        ],
        out_specs=(
            pl.BlockSpec((1, D, thw), lambda hi, bi, ti: (bi, 0, hi * n_ts + ti)),
            pl.BlockSpec((1, 1, D, 2), lambda hi, bi, ti: (bi, hi, 0, 0)),
        ),
        compiler_params=pltpu.CompilerParams(
            dimension_semantics=("parallel", "parallel", "arbitrary"),
            vmem_limit_bytes=_VMEM_LIMIT),
    )(x, wt)

    # Tiny group-statistics math in XLA (conv bias folded in analytically).
    # Zero-padded HW columns project to exactly zero, so counts use the real HW.
    s = jnp.sum(stats[:, :, :, 0], axis=1)                              # (B, D)
    ss = jnp.sum(stats[:, :, :, 1], axis=1)
    s_y = s + HW * b[None, :]
    ss_y = ss + 2.0 * b[None, :] * s + HW * (b * b)[None, :]
    cg = D // num_groups
    cnt = float(HW * cg)
    s_g = s_y.reshape(B, num_groups, cg).sum(-1)                        # (B, G)
    ss_g = ss_y.reshape(B, num_groups, cg).sum(-1)
    mean_g = s_g / cnt
    # Single-pass E[x^2]-E[x]^2 on bf16-operand products; clamp prevents NaNs.
    var_g = jnp.maximum(ss_g / cnt - mean_g * mean_g, 0.0)
    inv_g = jax.lax.rsqrt(var_g + eps)
    mean_c = jnp.repeat(mean_g, cg, axis=1)                             # (B, D)
    inv_c = jnp.repeat(inv_g, cg, axis=1)
    scale_c = gamma[None, :] * inv_c
    shift_c = beta[None, :] + (b[None, :] - mean_c) * scale_c
    ss_pack = jnp.stack([scale_c, shift_c], axis=-1)                    # (B, D, 2)

    y = pl.pallas_call(
        _proj_norm_kernel,
        out_shape=jax.ShapeDtypeStruct((B, D, HWp), out_dtype),
        grid=(B, n_t),
        in_specs=[
            pl.BlockSpec((1, D, thw), lambda bi, ti: (bi, 0, ti)),
            pl.BlockSpec((1, D, 2), lambda bi, ti: (bi, 0, 0)),
        ],
        out_specs=pl.BlockSpec((1, D, thw), lambda bi, ti: (bi, 0, ti)),
        compiler_params=pltpu.CompilerParams(
            dimension_semantics=("parallel", "parallel"),
            vmem_limit_bytes=_VMEM_LIMIT),
    )(proj, ss_pack)

    if HWp != HW:
        y = y[:, :, :HW]
    return y.reshape(B, D, H, W)


# ---------------------------------------------------------------------------
# Kernel set 2: prediction heads, all decoder levels collapsed into the M dim.
#   det-token stream : class Linear + bbox MLP + sub-bbox MLP
#   inter-token stream: verb Linear + interaction-bbox MLP
#   All outputs are lane-dense 128-multiple slabs; bf16 MXU operands.
# ---------------------------------------------------------------------------
def _make_det_heads_kernel(D):
    f32, bf16 = jnp.float32, jnp.bfloat16

    def kernel(h_ref, ref_ref,
               wh1_ref, bh1_ref, bw2_ref, bb2_ref, sw2_ref, sb2_ref,
               w3_ref, b3_ref, cls_ref, box_ref):
        h = h_ref[...]                                                   # (tm, D) bf16
        # fused first layer: [bbox_w1 | sub_w1 | class_w(pad to 128-mult)]
        y1 = jnp.dot(h, wh1_ref[...], preferred_element_type=f32) + bh1_ref[...]
        cls_ref[...] = y1[:, 2 * D:]                                     # lane-dense store
        hb = jnp.maximum(y1[:, :D], 0.0).astype(bf16)
        hs = jnp.maximum(y1[:, D:2 * D], 0.0).astype(bf16)

        hb2 = jnp.maximum(
            jnp.dot(hb, bw2_ref[...], preferred_element_type=f32) + bb2_ref[...], 0.0)
        hs2 = jnp.maximum(
            jnp.dot(hs, sw2_ref[...], preferred_element_type=f32) + sb2_ref[...], 0.0)
        hcat = jnp.concatenate([hb2, hs2], axis=1).astype(bf16)          # (tm, 2D)
        # block-diagonal fused last layer: obj box -> lanes 0:4, sub box -> 4:8
        raw = jnp.dot(hcat, w3_ref[...], preferred_element_type=f32) + b3_ref[...]
        box_ref[...] = jax.nn.sigmoid(raw + ref_ref[...])                # (tm, 128)

    return kernel


def _make_inter_heads_kernel(D):
    f32, bf16 = jnp.float32, jnp.bfloat16

    def kernel(r_ref, ref_ref, wr1_ref, br1_ref, iw2_ref, ib2_ref,
               iw3_ref, ib3_ref, verb_ref, ibox_ref):
        r = r_ref[...]                                                   # (tm, D) bf16
        # fused first layer: [inter_w1 | verb_w(pad to 128-mult)]
        z1 = jnp.dot(r, wr1_ref[...], preferred_element_type=f32) + br1_ref[...]
        verb_ref[...] = z1[:, D:]                                        # lane-dense store
        ri = jnp.maximum(z1[:, :D], 0.0).astype(bf16)
        ri2 = jnp.maximum(
            jnp.dot(ri, iw2_ref[...], preferred_element_type=f32) + ib2_ref[...], 0.0)
        i3 = jnp.dot(ri2.astype(bf16), iw3_ref[...],
                     preferred_element_type=f32) + ib3_ref[...]
        ibox_ref[...] = jax.nn.sigmoid(i3 + ref_ref[...])                # (tm, 128)

    return kernel


def detection_heads(hs, rels, init_ref, refs, init_sub, sub_refs,
                    init_inter, inter_refs, params, max_m_tile=512):
    f32, bf16 = jnp.float32, jnp.bfloat16
    L, B, Nq, D = hs.shape
    Ni = rels.shape[2]
    NC = params["class_w"].shape[1]
    NV = params["verb_w"].shape[1]
    NCp = _round_up(NC, 128)
    NVp = _round_up(NV, 128)
    Mh, Mr = L * B * Nq, L * B * Ni

    tm_h = _pick_m_tile(Mh, max_m_tile)
    Mhp = _round_up(Mh, tm_h)
    n_mh = Mhp // tm_h
    tm_r = _pick_m_tile(Mr, max_m_tile)
    Mrp = _round_up(Mr, tm_r)
    n_mr = Mrp // tm_r

    # Activations: collapse L into the matmul M dimension, bf16 DMA, pad rows.
    h_flat = hs.reshape(Mh, D).astype(bf16)
    r_flat = rels.reshape(Mr, D).astype(bf16)
    if Mhp != Mh:
        h_flat = jnp.pad(h_flat, ((0, Mhp - Mh), (0, 0)))
    if Mrp != Mr:
        r_flat = jnp.pad(r_flat, ((0, Mrp - Mr), (0, 0)))

    # references: level-l ref is init (l==0) else refs[l-1]; inverse_sigmoid and
    # 128-lane packing hoisted to the wrapper (tiny elementwise arrays).
    refs_all = jnp.concatenate([init_ref[None], refs], axis=0)           # (L,B,Nq,4)
    sub_all = jnp.concatenate([init_sub[None], sub_refs], axis=0)
    inter_all = jnp.concatenate([init_inter[None], inter_refs], axis=0)
    ref_h8 = jnp.concatenate([_inverse_sigmoid(refs_all),
                              _inverse_sigmoid(sub_all)], axis=-1).reshape(Mh, 8)
    ref_h = jnp.pad(ref_h8, ((0, Mhp - Mh), (0, _BOXP - 8)))
    ref_i4 = _inverse_sigmoid(inter_all).reshape(Mr, 4)
    ref_i = jnp.pad(ref_i4, ((0, Mrp - Mr), (0, _BOXP - 4)))

    p = params
    # Fused, lane-aligned weights (bf16 MXU operands; biases stay f32).
    class_wp = jnp.pad(p["class_w"], ((0, 0), (0, NCp - NC)))
    class_bp = jnp.pad(p["class_b"], ((0, 0), (0, NCp - NC)))
    verb_wp = jnp.pad(p["verb_w"], ((0, 0), (0, NVp - NV)))
    verb_bp = jnp.pad(p["verb_b"], ((0, 0), (0, NVp - NV)))
    wh1 = jnp.concatenate([p["bbox_w1"], p["sub_w1"], class_wp], axis=1).astype(bf16)
    bh1 = jnp.concatenate([p["bbox_b1"], p["sub_b1"], class_bp], axis=1)
    wr1 = jnp.concatenate([p["inter_w1"], verb_wp], axis=1).astype(bf16)
    br1 = jnp.concatenate([p["inter_b1"], verb_bp], axis=1)
    bw2 = p["bbox_w2"].astype(bf16)
    sw2 = p["sub_w2"].astype(bf16)
    iw2 = p["inter_w2"].astype(bf16)
    # block-diagonal last layer: [bbox_w3 -> lanes 0:4 ; sub_w3 -> lanes 4:8]
    w3 = jnp.concatenate(
        [jnp.pad(p["bbox_w3"], ((0, 0), (0, _BOXP - 4))),
         jnp.pad(p["sub_w3"], ((0, 0), (4, _BOXP - 8)))], axis=0).astype(bf16)
    b3 = (jnp.pad(p["bbox_b3"], ((0, 0), (0, _BOXP - 4)))
          + jnp.pad(p["sub_b3"], ((0, 0), (4, _BOXP - 8))))
    iw3 = jnp.pad(p["inter_w3"], ((0, 0), (0, _BOXP - 4))).astype(bf16)
    ib3 = jnp.pad(p["inter_b3"], ((0, 0), (0, _BOXP - 4)))

    const = lambda *_: (0, 0)
    # NOTE: at production scale, add pipeline_mode=pl.Buffered(1) on the constant
    # weight specs to keep them single-buffered in VMEM.
    cls_pack, box_pack = pl.pallas_call(
        _make_det_heads_kernel(D),
        out_shape=(jax.ShapeDtypeStruct((Mhp, NCp), f32),
                   jax.ShapeDtypeStruct((Mhp, _BOXP), f32)),
        grid=(n_mh,),
        in_specs=[
            pl.BlockSpec((tm_h, D), lambda mi: (mi, 0)),
            pl.BlockSpec((tm_h, _BOXP), lambda mi: (mi, 0)),
            pl.BlockSpec((D, 2 * D + NCp), const),
            pl.BlockSpec((1, 2 * D + NCp), const),
            pl.BlockSpec((D, D), const),
            pl.BlockSpec((1, D), const),
            pl.BlockSpec((D, D), const),
            pl.BlockSpec((1, D), const),
            pl.BlockSpec((2 * D, _BOXP), const),
            pl.BlockSpec((1, _BOXP), const),
        ],
        out_specs=(pl.BlockSpec((tm_h, NCp), lambda mi: (mi, 0)),
                   pl.BlockSpec((tm_h, _BOXP), lambda mi: (mi, 0))),
        compiler_params=pltpu.CompilerParams(
            dimension_semantics=("parallel",),
            vmem_limit_bytes=_VMEM_LIMIT),
    )(h_flat, ref_h, wh1, bh1, bw2, p["bbox_b2"], sw2, p["sub_b2"], w3, b3)

    verb_pack, ibox_pack = pl.pallas_call(
        _make_inter_heads_kernel(D),
        out_shape=(jax.ShapeDtypeStruct((Mrp, NVp), f32),
                   jax.ShapeDtypeStruct((Mrp, _BOXP), f32)),
        grid=(n_mr,),
        in_specs=[
            pl.BlockSpec((tm_r, D), lambda mi: (mi, 0)),
            pl.BlockSpec((tm_r, _BOXP), lambda mi: (mi, 0)),
            pl.BlockSpec((D, D + NVp), const),
            pl.BlockSpec((1, D + NVp), const),
            pl.BlockSpec((D, D), const),
            pl.BlockSpec((1, D), const),
            pl.BlockSpec((D, _BOXP), const),
            pl.BlockSpec((1, _BOXP), const),
        ],
        out_specs=(pl.BlockSpec((tm_r, NVp), lambda mi: (mi, 0)),
                   pl.BlockSpec((tm_r, _BOXP), lambda mi: (mi, 0))),
        compiler_params=pltpu.CompilerParams(
            dimension_semantics=("parallel",),
            vmem_limit_bytes=_VMEM_LIMIT),
    )(r_flat, ref_i, wr1, br1, iw2, p["inter_b2"], iw3, ib3)

    outputs_class = cls_pack[:Mh, :NC].reshape(L, B, Nq, NC)
    box = box_pack[:Mh].reshape(L, B, Nq, _BOXP)
    outputs_coord = box[..., 0:4]
    outputs_sub = box[..., 4:8]
    outputs_verb = verb_pack[:Mr, :NV].reshape(L, B, Ni, NV)
    outputs_inter = ibox_pack[:Mr, 0:4].reshape(L, B, Ni, 4)
    return outputs_class, outputs_coord, outputs_sub, outputs_verb, outputs_inter


# ---------------------------------------------------------------------------
# Deterministic parameter init (mirrors Detector.__init__ with default flags)
# ---------------------------------------------------------------------------
def init_detector_params(key, D, NC, NV, backbone_channels):
    prior_prob = 0.01
    bias_value = -math.log((1 - prior_prob) / prior_prob)
    params = {}
    keys = jax.random.split(key, 64)
    kit = iter(keys)

    def linear_w(k, fan_in, fan_out):
        bound = 1.0 / math.sqrt(fan_in)
        return jax.random.uniform(k, (fan_in, fan_out), jnp.float32, -bound, bound)

    def linear_b(k, fan_in, fan_out):
        bound = 1.0 / math.sqrt(fan_in)
        return jax.random.uniform(k, (1, fan_out), jnp.float32, -bound, bound)

    # input_proj: 1x1 conv (xavier_uniform, bias=0) + GroupNorm(32, D)
    proj = []
    for cin in backbone_channels:
        bound = math.sqrt(6.0 / (cin + D))
        w = jax.random.uniform(next(kit), (cin, D), jnp.float32, -bound, bound)
        proj.append(dict(w=w,
                         b=jnp.zeros((D,), jnp.float32),
                         gamma=jnp.ones((D,), jnp.float32),
                         beta=jnp.zeros((D,), jnp.float32)))
    params["input_proj"] = proj

    # class / verb heads: default weight init, bias = -log((1-p)/p)
    params["class_w"] = linear_w(next(kit), D, NC)
    params["class_b"] = jnp.full((1, NC), bias_value, jnp.float32)
    params["verb_w"] = linear_w(next(kit), D, NV)
    params["verb_b"] = jnp.full((1, NV), bias_value, jnp.float32)

    # 3-layer box MLPs; last layer weight = 0, bias per __init__
    def mlp_params(prefix, last_bias):
        params[f"{prefix}_w1"] = linear_w(next(kit), D, D)
        params[f"{prefix}_b1"] = linear_b(next(kit), D, D)
        params[f"{prefix}_w2"] = linear_w(next(kit), D, D)
        params[f"{prefix}_b2"] = linear_b(next(kit), D, D)
        params[f"{prefix}_w3"] = jnp.zeros((D, 4), jnp.float32)
        params[f"{prefix}_b3"] = last_bias.reshape(1, 4)

    refine_bias = jnp.array([0.0, 0.0, -2.0, -2.0], jnp.float32)  # no-refine branch
    zero_bias = jnp.zeros((4,), jnp.float32)
    mlp_params("bbox", refine_bias)
    mlp_params("sub", refine_bias)
    mlp_params("inter", zero_bias)
    return params


# ---------------------------------------------------------------------------
# Forward (default-flag Detector.forward)
# ---------------------------------------------------------------------------
def detector_forward(features_nchw, transformer_outputs, params, num_groups=32,
                     src_dtype=jnp.float32):
    srcs = []
    for feat, p in zip(features_nchw, params["input_proj"]):
        srcs.append(input_proj_groupnorm(feat, p["w"], p["b"], p["gamma"], p["beta"],
                                         num_groups, out_dtype=src_dtype))

    (hs, rels, init_reference, init_sub_reference, init_inter_reference,
     references, sub_references, inter_references, class_enc, verb_enc) = transformer_outputs

    (outputs_class, outputs_coord, outputs_sub,
     outputs_verb, outputs_inter) = detection_heads(
        hs, rels, init_reference, references, init_sub_reference, sub_references,
        init_inter_reference, inter_references, params)

    out = {
        "pred_logits": outputs_class[-1],
        "pred_boxes": outputs_coord[-1],
        "pred_verb_logits": outputs_verb[-1],
        "pred_sub_boxes": outputs_sub[-1],
        "pred_interaction_boxes": outputs_inter[-1],
        "enc_outputs": {
            "pred_logits": class_enc,
            "pred_boxes": init_reference,
            "pred_verb_logits": verb_enc,
            "pred_sub_boxes": init_sub_reference,
            "pred_interaction_boxes": init_inter_reference,
        },
    }
    return out, srcs


if __name__ == "__main__":
    key = jax.random.PRNGKey(0)
    B, D = 2, 32           # batch, hidden_dim (divisible by 32 for GroupNorm)
    L = 3                  # decoder layers -> hs.shape[0]
    Nq, Ni = 8, 8          # num_queries, num_inter_queries
    NC, NV = 8, 6          # num_classes, num_verbs
    backbone_channels = [8, 16]
    spatial = [(32, 32), (16, 16)]   # HW=1024 (2x512 tiles, 2 halves) and HW=256

    ks = jax.random.split(key, 16)
    features = [jax.random.normal(ks[i], (B, c, h, w), jnp.float32)
                for i, (c, (h, w)) in enumerate(zip(backbone_channels, spatial))]

    hs = jax.random.normal(ks[4], (L, B, Nq, D), jnp.float32)
    rels = jax.random.normal(ks[5], (L, B, Ni, D), jnp.float32)
    init_reference = jax.random.uniform(ks[6], (B, Nq, 4), jnp.float32, 0.05, 0.95)
    init_sub_reference = jax.random.uniform(ks[7], (B, Nq, 4), jnp.float32, 0.05, 0.95)
    init_inter_reference = jax.random.uniform(ks[8], (B, Ni, 4), jnp.float32, 0.05, 0.95)
    references = jax.random.uniform(ks[9], (L - 1, B, Nq, 4), jnp.float32, 0.05, 0.95)
    sub_references = jax.random.uniform(ks[10], (L - 1, B, Nq, 4), jnp.float32, 0.05, 0.95)
    inter_references = jax.random.uniform(ks[11], (L - 1, B, Ni, 4), jnp.float32, 0.05, 0.95)
    class_enc = jax.random.normal(ks[12], (B, Nq, NC), jnp.float32)
    verb_enc = jax.random.normal(ks[13], (B, Ni, NV), jnp.float32)

    params = init_detector_params(ks[14], D, NC, NV, backbone_channels)

    transformer_outputs = (hs, rels, init_reference, init_sub_reference,
                           init_inter_reference, references, sub_references,
                           inter_references, class_enc, verb_enc)

    out, srcs = detector_forward(features, transformer_outputs, params)
    jax.block_until_ready(out)
    jax.block_until_ready(srcs)
    print("KERNEL_OK")
</pallas_src>

<mosaic_0001>
module attributes {stable_mosaic.version = 11 : i64} {
  func.func @_proj_stats_kernel(%arg0: i32, %arg1: i32, %arg2: i32, %arg3: memref<1x8x512xbf16, #tpu.memory_space<vmem>>, %arg4: memref<32x8xbf16, #tpu.memory_space<vmem>>, %arg5: memref<1x32x512xbf16, #tpu.memory_space<vmem>>, %arg6: memref<1x1x32x2xf32, #tpu.memory_space<vmem>>) attributes {dimension_semantics = [#tpu.dimension_semantics<parallel>, #tpu.dimension_semantics<parallel>, #tpu.dimension_semantics<arbitrary>], iteration_bounds = array<i64: 2, 2, 1>, scalar_prefetch = 0 : i64, scratch_operands = 0 : i64, tpu.core_type = #tpu.core_type<tc>, window_params = [{transform_indices = @transform_0, window_bounds = array<i64: 1, 8, 512>}, {pipeline_mode = #tpu.pipeline_mode<synchronous>, transform_indices = @transform_1, window_bounds = array<i64: 32, 8>}, {transform_indices = @transform_2, window_bounds = array<i64: 1, 32, 512>}, {transform_indices = @transform_3, window_bounds = array<i64: 1, 1, 32, 2>}]} {
    %c0 = arith.constant 0 : index
    %c0_0 = arith.constant 0 : index
    %0 = vector.load %arg4[%c0, %c0_0] : memref<32x8xbf16, #tpu.memory_space<vmem>>, vector<32x8xbf16>
    %c0_1 = arith.constant 0 : index
    %c0_2 = arith.constant 0 : index
    %c0_3 = arith.constant 0 : index
    %1 = vector.load %arg3[%c0_1, %c0_2, %c0_3] : memref<1x8x512xbf16, #tpu.memory_space<vmem>>, vector<1x8x512xbf16>
    %2 = vector.shape_cast %1 : vector<1x8x512xbf16> to vector<8x512xbf16>
    %cst = arith.constant dense<0.000000e+00> : vector<32x512xf32>
    %3 = tpu.matmul %0, %2, %cst {dimension_numbers = #tpu.dot_dimension_numbers<[1], [0], [0], [1], [0, 0, 1, 1], [], []>} : vector<32x8xbf16>, vector<8x512xbf16>, vector<32x512xf32> -> vector<32x512xf32>
    %4 = arith.truncf %3 : vector<32x512xf32> to vector<32x512xbf16>
    %c0_4 = arith.constant 0 : index
    %c0_5 = arith.constant 0 : index
    %c0_6 = arith.constant 0 : index
    %5 = vector.load %arg5[%c0_4, %c0_5, %c0_6] : memref<1x32x512xbf16, #tpu.memory_space<vmem>>, vector<1x32x512xbf16>
    %6 = vector.shape_cast %5 : vector<1x32x512xbf16> to vector<32x512xbf16>
    %7 = vector.shape_cast %4 : vector<32x512xbf16> to vector<1x32x512xbf16>
    tpu.vector_store %arg5[%c0_4, %c0_5, %c0_6], %7 {strides = array<i32>} : memref<1x32x512xbf16, #tpu.memory_space<vmem>>, vector<1x32x512xbf16>,
    %cst_7 = arith.constant dense<0.000000e+00> : vector<32xf32>
    %8 = vector.multi_reduction <add>, %3, %cst_7 [1] : vector<32x512xf32> to vector<32xf32>
    %9 = vector.shape_cast %8 : vector<32xf32> to vector<32x1xf32>
    %10 = arith.mulf %3, %3 : vector<32x512xf32>
    %cst_8 = arith.constant dense<0.000000e+00> : vector<32xf32>
    %11 = vector.multi_reduction <add>, %10, %cst_8 [1] : vector<32x512xf32> to vector<32xf32>
    %12 = vector.shape_cast %11 : vector<32xf32> to vector<32x1xf32>
    %13 = tpu.concatenate %9, %12 in 1 : vector<32x1xf32>, vector<32x1xf32> -> vector<32x2xf32>
    %c0_i32 = arith.constant 0 : i32
    %14 = arith.cmpi eq, %arg2, %c0_i32 : i32
    %15 = arith.extui %14 : i1 to i32
    %c0_i32_9 = arith.constant 0 : i32
    %16 = arith.cmpi ne, %15, %c0_i32_9 : i32
    scf.if %16 {
      %c0_12 = arith.constant 0 : index
      %c0_13 = arith.constant 0 : index
      %c0_14 = arith.constant 0 : index
      %c0_15 = arith.constant 0 : index
      %20 = vector.load %arg6[%c0_12, %c0_13, %c0_14, %c0_15] : memref<1x1x32x2xf32, #tpu.memory_space<vmem>>, vector<1x1x32x2xf32>
      %21 = vector.shape_cast %20 : vector<1x1x32x2xf32> to vector<32x2xf32>
      %22 = vector.shape_cast %13 : vector<32x2xf32> to vector<1x1x32x2xf32>
      tpu.vector_store %arg6[%c0_12, %c0_13, %c0_14, %c0_15], %22 {strides = array<i32>} : memref<1x1x32x2xf32, #tpu.memory_space<vmem>>, vector<1x1x32x2xf32>,
    } else {
    }
    %c0_i32_10 = arith.constant 0 : i32
    %17 = arith.cmpi sgt, %arg2, %c0_i32_10 : i32
    %18 = arith.extui %17 : i1 to i32
    %c0_i32_11 = arith.constant 0 : i32
    %19 = arith.cmpi ne, %18, %c0_i32_11 : i32
    scf.if %19 {
      %c0_12 = arith.constant 0 : index
      %c0_13 = arith.constant 0 : index
      %c0_14 = arith.constant 0 : index
      %c0_15 = arith.constant 0 : index
      %20 = vector.load %arg6[%c0_12, %c0_13, %c0_14, %c0_15] : memref<1x1x32x2xf32, #tpu.memory_space<vmem>>, vector<1x1x32x2xf32>
      %21 = vector.shape_cast %20 : vector<1x1x32x2xf32> to vector<32x2xf32>
      %22 = arith.addf %21, %13 : vector<32x2xf32>
      %c0_16 = arith.constant 0 : index
      %c0_17 = arith.constant 0 : index
      %c0_18 = arith.constant 0 : index
      %c0_19 = arith.constant 0 : index
      %23 = vector.load %arg6[%c0_16, %c0_17, %c0_18, %c0_19] : memref<1x1x32x2xf32, #tpu.memory_space<vmem>>, vector<1x1x32x2xf32>
      %24 = vector.shape_cast %23 : vector<1x1x32x2xf32> to vector<32x2xf32>
      %25 = vector.shape_cast %22 : vector<32x2xf32> to vector<1x1x32x2xf32>
      tpu.vector_store %arg6[%c0_16, %c0_17, %c0_18, %c0_19], %25 {strides = array<i32>} : memref<1x1x32x2xf32, #tpu.memory_space<vmem>>, vector<1x1x32x2xf32>,
    } else {
    }
    return
  }
  func.func @transform_0(%arg0: i32, %arg1: i32, %arg2: i32) -> (i32, i32, i32) {
    %c1_i32 = arith.constant 1 : i32
    %0 = arith.muli %arg0, %c1_i32 : i32
    %1 = arith.addi %0, %arg2 : i32
    %c0_i32 = arith.constant 0 : i32
    %c0_i32_0 = arith.constant 0 : i32
    return %arg1, %c0_i32, %1 : i32, i32, i32
  }
  func.func @transform_1(%arg0: i32, %arg1: i32, %arg2: i32) -> (i32, i32) {
    %c0_i32 = arith.constant 0 : i32
    %c0_i32_0 = arith.constant 0 : i32
    %c0_i32_1 = arith.constant 0 : i32
    return %c0_i32, %c0_i32_0 : i32, i32
  }
  func.func @transform_2(%arg0: i32, %arg1: i32, %arg2: i32) -> (i32, i32, i32) {
    %c1_i32 = arith.constant 1 : i32
    %0 = arith.muli %arg0, %c1_i32 : i32
    %1 = arith.addi %0, %arg2 : i32
    %c0_i32 = arith.constant 0 : i32
    %c0_i32_0 = arith.constant 0 : i32
    return %arg1, %c0_i32, %1 : i32, i32, i32
  }
  func.func @transform_3(%arg0: i32, %arg1: i32, %arg2: i32) -> (i32, i32, i32, i32) {
    %c0_i32 = arith.constant 0 : i32
    %c0_i32_0 = arith.constant 0 : i32
    %c0_i32_1 = arith.constant 0 : i32
    return %arg1, %arg0, %c0_i32, %c0_i32_0 : i32, i32, i32, i32
  }
}

</mosaic_0001>

<llo_original>
// kernel: tpu_custom_call.1
$region0: #{tpu_custom_call.1}
  #allocation0 [shape = 'u32[]', space=smem, size = 0x4, offset = 0x4, fixed_abs, tag = 'smem constant byte address 0x4 - core index']
  #allocation1 [shape = 'u32[144,128]{1,0:T(1,128)}', space=vmem, size = 0x12000, scoped, tag = 'internal scratch']
  %s0 = inlined_call_operand.hbm [shape: bf16[2,8,1024], index: 0, kind: input, shape index: {}]
  %s1 = inlined_call_operand.vmem [shape: bf16[32,8], index: 1, kind: input, shape index: {}]
  %s2 = inlined_call_operand.hbm [shape: bf16[2,32,1024], index: 2, kind: output, shape index: {0}]
  %s3 = inlined_call_operand.vmem [shape: f32[2,2,32,2], index: 3, kind: output, shape index: {1}]
  %4 = xla_tuple %s2, %s3
  %s5 = sld [smem:[#allocation0]]
  $region61: #{tpu_custom_call.1} parent=0
    _
  %s7 = ssub.s32 1, %s5
  %s8 = scalar_select 0, %s7, %s5
  $region1: #{tpu_custom_call.1} parent=0
    #allocation2 [shape = 'u8[16384]{0}', space=vmem, size = 0x4000, scoped, tag = 'input window, operand 0']
    #allocation3 [shape = 's32[2]{0}', space=sflag, size = 0x8, scoped, tag = 'scoped memory for tpu_custom_call.1']
    #allocation4 [shape = 's32[2]{0}', space=sflag, size = 0x8, scoped, tag = 'scoped memory for tpu_custom_call.1']
    #allocation5 [shape = 'u8[65536]{0}', space=vmem, size = 0x10000, scoped, tag = 'output window, operand 0']
    %9 = vsyncpa [#allocation3], 0
    %s10 = scalar_lea.sflag [#allocation3], 1
    %11 = vsyncpa %s10, 0
    %12 = vsyncpa [#allocation4], 0
    %s13 = scalar_lea.sflag [#allocation4], 1
    %14 = vsyncpa %s13, 0
    loop: start=0, step=1, limit=6
    $region2: #{tpu_custom_call.1} parent=1 // loop_pre_header
      _
    $region3: #{tpu_custom_call.1} parent=1 // loop_header
      %s16 = sphi 0, %s20
      %p17 = scmp.ge.s32.totalorder %s16, 6
      %s23 = sphi 0, %s42
      %s24 = sphi 0, %s38
      %s25 = sphi 0, %s34
      %s26 = sphi 0, %s23
      %s27 = sphi 0, %s24
      %s28 = sphi 0, %s25
      %s29 = sphi 0, %s26
      %s30 = sphi 0, %s27
      %s31 = sphi 0, %s28
      %s49 = sphi 0, %s51
      %s52 = sphi 0, %s49
      %s53 = sphi 0, %s52
      %s69 = sphi 0, %s53
      %s73 = sphi 0, %s73
      %s75 = sphi 0, %s73
      %s76 = sphi 0, %s75
      %s90 = sphi 0, %s76
      %s100 = sphi 0, %s102
      %s103 = sphi 0, %s100
      %s104 = sphi 0, %s103
      %s120 = sphi 0, %s104
      %s128 = sphi 0, %s130
      %s131 = sphi 0, %s128
      %s132 = sphi 0, %s131
      %s148 = sphi 0, %s132
    $region4: #{tpu_custom_call.1} parent=1 // loop_header_branch
      %19 = sbr.rel (%p17) target = $region8
    $region5: #{tpu_custom_call.1} parent=1 // loop_body
      %s21 = ssub.s32 %s16, 1
      %s22 = ssub.s32 %s16, 2
      %s32 = sadd.s32 1, %s25
      %p33 = scmp.ge.s32.totalorder %s32, 1
      %s34 = scalar_select %p33, 0, %s32
      %s35 = sadd.s32 1, %s24
      %s36 = scalar_select %p33, %s35, %s24
      %p37 = scmp.ge.s32.totalorder %s36, 2
      %s38 = scalar_select %p37, 0, %s36
      %s39 = sadd.s32 1, %s23
      %s40 = scalar_select %p37, %s39, %s23
      %p41 = scmp.ge.s32.totalorder %s40, 2
      %s42 = scalar_select %p41, 0, %s40
      %s43 = sadd.s32 %s23, %s25
      %s44 = sadd.s32 %s42, %s34
      %s45 = ssub.s32 %s24, %s38
      %s46 = ssub.s32 %s43, %s44
      %s47 = sor.u32 %s45, %s46
      %p48 = scmp.eq.s32.totalorder %s47, 0
      %s50 = sadd.s32 %s49, 1
      %s51 = scalar_select %p48, %s49, %s50
      %p54 = pneg %p48
      %p55 = scmp.eq.s32.totalorder %s16, 3
      %p56 = por %p54, %p55
      %p57 = scmp.ne.s32.totalorder %s49, %s52
      %p58 = scmp.eq.s32.totalorder %s16, 0
      %p59 = por %p57, %p58
      %p60 = scmp.ne.s32.totalorder %s49, %s52
      %p61 = scmp.eq.s32.totalorder %s21, 3
      %p62 = por %p60, %p61
      %p63 = scmp.ne.s32.totalorder %s52, %s53
      %p64 = scmp.eq.s32.totalorder %s21, 0
      %p65 = por %p63, %p64
      %p66 = scmp.ne.s32.totalorder %s52, %s53
      %p67 = scmp.eq.s32.totalorder %s22, 3
      %p68 = por %p66, %p67
      %p70 = scmp.ne.s32.totalorder %s53, %s69
      %p71 = scmp.eq.s32.totalorder %s22, 0
      %p72 = por %p70, %p71
      %s74 = sadd.s32 %s73, 1
      %p77 = scmp.eq.s32.totalorder %s16, 3
      %p78 = scmp.ne.s32.totalorder %s73, %s75
      %p79 = scmp.eq.s32.totalorder %s16, 0
      %p80 = por %p78, %p79
      %p81 = scmp.ne.s32.totalorder %s73, %s75
      %p82 = scmp.eq.s32.totalorder %s21, 3
      %p83 = por %p81, %p82
      %p84 = scmp.ne.s32.totalorder %s75, %s76
      %p85 = scmp.eq.s32.totalorder %s21, 0
      %p86 = por %p84, %p85
      %p87 = scmp.ne.s32.totalorder %s75, %s76
      %p88 = scmp.eq.s32.totalorder %s22, 3
      %p89 = por %p87, %p88
      %p91 = scmp.ne.s32.totalorder %s76, %s90
      %p92 = scmp.eq.s32.totalorder %s22, 0
      %p93 = por %p91, %p92
      %s94 = sadd.s32 %s23, %s25
      %s95 = sadd.s32 %s42, %s34
      %s96 = ssub.s32 %s24, %s38
      %s97 = ssub.s32 %s94, %s95
      %s98 = sor.u32 %s96, %s97
      %p99 = scmp.eq.s32.totalorder %s98, 0
      %s101 = sadd.s32 %s100, 1
      %s102 = scalar_select %p99, %s100, %s101
      %p105 = pneg %p99
      %p106 = scmp.eq.s32.totalorder %s16, 3
      %p107 = por %p105, %p106
      %p108 = scmp.ne.s32.totalorder %s100, %s103
      %p109 = scmp.eq.s32.totalorder %s16, 0
      %p110 = por %p108, %p109
      %p111 = scmp.ne.s32.totalorder %s100, %s103
      %p112 = scmp.eq.s32.totalorder %s21, 3
      %p113 = por %p111, %p112
      %p114 = scmp.ne.s32.totalorder %s103, %s104
      %p115 = scmp.eq.s32.totalorder %s21, 0
      %p116 = por %p114, %p115
      %p117 = scmp.ne.s32.totalorder %s103, %s104
      %p118 = scmp.eq.s32.totalorder %s22, 3
      %p119 = por %p117, %p118
      %p121 = scmp.ne.s32.totalorder %s104, %s120
      %p122 = scmp.eq.s32.totalorder %s22, 0
      %p123 = por %p121, %p122
      %s124 = ssub.s32 %s24, %s38
      %s125 = ssub.s32 %s23, %s42
      %s126 = sor.u32 %s124, %s125
      %p127 = scmp.eq.s32.totalorder %s126, 0
      %s129 = sadd.s32 %s128, 1
      %s130 = scalar_select %p127, %s128, %s129
      %p133 = pneg %p127
      %p134 = scmp.eq.s32.totalorder %s16, 3
      %p135 = por %p133, %p134
      %p136 = scmp.ne.s32.totalorder %s128, %s131
      %p137 = scmp.eq.s32.totalorder %s16, 0
      %p138 = por %p136, %p137
      %p139 = scmp.ne.s32.totalorder %s128, %s131
      %p140 = scmp.eq.s32.totalorder %s21, 3
      %p141 = por %p139, %p140
      %p142 = scmp.ne.s32.totalorder %s131, %s132
      %p143 = scmp.eq.s32.totalorder %s21, 0
      %p144 = por %p142, %p143
      %p145 = scmp.ne.s32.totalorder %s131, %s132
      %p146 = scmp.eq.s32.totalorder %s22, 3
      %p147 = por %p145, %p146
      %p149 = scmp.ne.s32.totalorder %s132, %s148
      %p150 = scmp.eq.s32.totalorder %s22, 0
      %p151 = por %p149, %p150
      %p152 = scmp.le.s32.totalorder 1, %s16
      %p153 = scmp.lt.s32.totalorder %s16, 5
      %p154 = pnand %p152, %p153
      %p155 = pneg %p154
      // Predicated region
      $region9: #{tpu_custom_call.1} parent=5 // pred_check
        _
      $region10: #{tpu_custom_call.1} parent=5 // pred_check_branch
        %157 = sbr.rel (%p154) target = $region12
      $region11: #{tpu_custom_call.1} parent=5 // pred_region
        %s158 = ssub.s32 %s16, 1
        // Predicated region
        $region13: #{tpu_custom_call.1} parent=11 // pred_check
          %p159 = pneg %p86
        $region14: #{tpu_custom_call.1} parent=11 // pred_check_branch
          %161 = sbr.rel (%p159) target = $region16
        $region15: #{tpu_custom_call.1} parent=11 // pred_region
          _
        $region16: #{tpu_custom_call.1} parent=11 // pred_fallthru
          _
      $region12: #{tpu_custom_call.1} parent=5 // pred_fallthru
        _
      %p162 = scmp.lt.s32.totalorder %s16, 4
      // Predicated region
      $region17: #{tpu_custom_call.1} parent=5 // pred_check
        %p163 = pneg %p162
      $region18: #{tpu_custom_call.1} parent=5 // pred_check_branch
        %165 = sbr.rel (%p163) target = $region20
      $region19: #{tpu_custom_call.1} parent=5 // pred_region
        // Predicated region
        $region21: #{tpu_custom_call.1} parent=19 // pred_check
          %p166 = pneg %p59
        $region22: #{tpu_custom_call.1} parent=19 // pred_check_branch
          %168 = sbr.rel (%p166) target = $region24
        $region23: #{tpu_custom_call.1} parent=19 // pred_region
          %s169 = sand.u32 %s49, 1
          %s170 = scalar_lea.sflag [#allocation3], %s169
          %s171 = sand.u32 %s49, 1
          %s172 = smul.addr %s171, 16
          %s173 = scalar_lea.vmem [#allocation2], %s172
          %s174 = sadd.s32 %s23, %s25
          %s175 = smul.u32 4, %s174
          %s177 = ssub.s32 256, 256
          %178 = vsyncadd %s170, %s177
          %s179 = smul.addr %s24, 8
          %s180 = sadd.s32 %s175, %s179
          %s181 = smul.addr %s180, 64
          %s182 = scalar_lea.hbm %s0, %s181
          %s184 = sshll.u32 %s173, 4
          %s185 = int_to_ptr.vmem [resolvable:$true] %s184
          %187 = dma.hbm_to_vmem [thread:$0]  %s182, 256, %s185, %s170
        $region24: #{tpu_custom_call.1} parent=19 // pred_fallthru
          _
      $region20: #{tpu_custom_call.1} parent=5 // pred_fallthru
        _
      %p188 = scmp.le.s32.totalorder 1, %s16
      %p189 = scmp.lt.s32.totalorder %s16, 5
      %p190 = pnand %p188, %p189
      %p191 = pneg %p190
      // Predicated region
      $region25: #{tpu_custom_call.1} parent=5 // pred_check
        _
      $region26: #{tpu_custom_call.1} parent=5 // pred_check_branch
        %193 = sbr.rel (%p190) target = $region28
      $region27: #{tpu_custom_call.1} parent=5 // pred_region
        %s194 = ssub.s32 %s16, 1
        %s195 = sand.u32 %s52, 1
        %s196 = scalar_lea.sflag [#allocation3], %s195
        %s197 = sand.u32 %s52, 1
        %s198 = smul.addr %s197, 16
        %s199 = scalar_lea.vmem [#allocation2], %s198
        // Predicated region
        $region29: #{tpu_custom_call.1} parent=27 // pred_check
          %p200 = pneg %p65
        $region30: #{tpu_custom_call.1} parent=27 // pred_check_branch
          %202 = sbr.rel (%p200) target = $region32
        $region31: #{tpu_custom_call.1} parent=27 // pred_region
          %203 = dma.done %s196, 256
        $region32: #{tpu_custom_call.1} parent=27 // pred_fallthru
          _
        %s204 = sand.u32 %s52, 1
        %s205 = scalar_lea.sflag [#allocation3], %s204
        %s206 = sand.u32 %s52, 1
        %s207 = smul.addr %s206, 16
        %s208 = scalar_lea.vmem [#allocation2], %s207
        %p209 = pneg %p65
        %p210 = pneg %p62
        %p211 = pneg %p86
        %p212 = pneg %p83
        %p213 = pneg %p116
        %p214 = pneg %p113
        %s215 = sand.u32 %s103, 1
        %s216 = scalar_lea.sflag [#allocation4], %s215
        %s217 = sand.u32 %s103, 1
        %s218 = smul.addr %s217, 64
        %s219 = scalar_lea.vmem [#allocation5], %s218
        %p220 = pneg %p144
        %p221 = pneg %p141
        %p222 = scmp.lt.s32.totalorder %s27, 1
        %s223 = scalar_select %p222, %s27, 1
        %p224 = scmp.lt.s32.totalorder %s26, 1
        %s225 = scalar_select %p224, %s26, 1
        %s226 = smul.addr %s225, 4
        %s227 = smul.addr %s223, 8
        %s228 = sadd.s32 %s226, %s227
        %s229 = smul.addr %s228, 8
        %s230 = scalar_lea.vmem %s3, %s229
        %s231 = sadd.s32 %s26, %s28
        %s232 = smul.u32 4, %s231
        %s233 = sadd.s32 %s26, %s28
        %s234 = smul.u32 4, %s233
        %p235 = scmp.lt.s32.totalorder %s27, 1
        %s236 = scalar_select %p235, %s27, 1
        %p237 = scmp.lt.s32.totalorder %s26, 1
        %s238 = scalar_select %p237, %s26, 1
        %s239 = smul.addr %s238, 4
        %s240 = smul.addr %s236, 8
        %s241 = sadd.s32 %s239, %s240
        %s242 = smul.addr %s241, 8
        %s243 = scalar_lea.vmem %s3, %s242
        %v245 = vld [vmem:[%s1] sm:$0xf]
        %v246 = vld [vmem:[%s1 + $0x4] sm:$0xf]
        %v247 = vld [vmem:[%s1 + $0x8] sm:$0xf]
        %v248 = vld [vmem:[%s1 + $0xc] sm:$0xf]
        %v249 = vld [vmem:[%s199] sm:$0xff]
        %v250 = vld [vmem:[%s199 + $0x8] sm:$0xff]
        %v255 = vunpack.c.l.b16 %v245
        %v256 = vunpack.c.l.b16 %v246
        %v257 = vunpack.c.l.b16 %v247
        %v258 = vunpack.c.l.b16 %v248
        %v259 = vpack.c.b16 %v256, %v255
        %v260 = vpack.c.b16 %v258, %v257
        %v263 = vunpack.c.l.b16 %v249
        %v264 = vunpack.c.h.b16 %v249
        %v265 = vunpack.c.l.b16 %v250
        %v266 = vunpack.c.h.b16 %v250
        %v267 = vpack.c.b16 %v263, %v263
        %v268 = vpack.c.b16 %v264, %v264
        %v269 = vpack.c.b16 %v265, %v265
        %v270 = vpack.c.b16 %v266, %v266
        %vm271 = vcmask 64512
        %v273 = vsel %vm271, %v259, 0
        %v276 = vsel %vm271, %v260, 0
        %vm278 = vcmask 1043456
        %v280 = vsel %vm278, %v267, 0
        %v283 = vsel %vm278, %v268, 0
        %v286 = vsel %vm278, %v269, 0
        %v289 = vsel %vm278, %v270, 0
        %291 = vmatprep.subr.bf16.mxu0 %v283
        %292 = vmatpush1.bf16.msra.mxu0 %v280
        %293 = vmatprep.subr.bf16.mxu0 0
        %294 = vmatpush1.bf16.msra.mxu0 0
        %295 = vmatprep.subr.bf16.mxu0 0
        %296 = vmatpush1.bf16.msra.mxu0 0
        %297 = vmatprep.subr.bf16.mxu0 0
        %298 = vmatpush1.bf16.msra.mxu0 0
        %299 = vmatprep.subr.bf16.mxu0 0
        %300 = vmatpush1.bf16.msra.mxu0 0
        %301 = vmatprep.subr.bf16.mxu0 0
        %302 = vmatpush1.bf16.msra.mxu0 0
        %303 = vmatprep.subr.bf16.mxu0 0
        %304 = vmatpush1.bf16.msra.mxu0 0
        %305 = vmatprep.subr.bf16.mxu0 0
        %306 = vmatpush1.bf16.msra.mxu0 0
        %307 = vmatprep.subr.bf16.mxu0 0
        %308 = vmatpush1.bf16.msra.mxu0 0
        %309 = vmatprep.subr.bf16.mxu0 0
        %310 = vmatpush1.bf16.msra.mxu0 0
        %311 = vmatprep.subr.bf16.mxu0 0
        %312 = vmatpush1.bf16.msra.mxu0 0
        %313 = vmatprep.subr.bf16.mxu0 0
        %314 = vmatpush1.bf16.msra.mxu0 0
        %315 = vmatprep.subr.bf16.mxu0 0
        %316 = vmatpush1.bf16.msra.mxu0 0
        %317 = vmatprep.subr.bf16.mxu0 0
        %318 = vmatpush1.bf16.msra.mxu0 0
        %319 = vmatprep.subr.bf16.mxu0 0
        %320 = vmatpush1.bf16.msra.mxu0 0
        %321 = vmatprep.subr.bf16.mxu0 0
        %322 = vmatpush1.bf16.msra.mxu0 0
        %323 = vmatprep.mubr.bf16.mxu0 0
        %324 = vmatmul.mubr.bf16.gmra.mrb[0].mxu0 %v273
        %v325 = vpop.f32.mrb[0].mxu0
        %v326 = vadd.f32 0.0, %v325
        %v327 = vpop.f32.mrb[0].mxu0
        %v328 = vadd.f32 0.0, %v327
        %v329 = vpop.f32.mrb[0].mxu0
        %v330 = vadd.f32 0.0, %v329
        %v331 = vpop.f32.mrb[0].mxu0
        %v332 = vadd.f32 0.0, %v331
        %333 = vmatprep.mubr.bf16.mxu0 0
        %334 = vmatmul.mubr.bf16.gmra.mrb[0].mxu0 %v276
        %v335 = vpop.f32.mrb[0].mxu0
        %v336 = vadd.f32 0.0, %v335
        %v337 = vpop.f32.mrb[0].mxu0
        %v338 = vadd.f32 0.0, %v337
        %v339 = vpop.f32.mrb[0].mxu0
        %v340 = vadd.f32 0.0, %v339
        %v341 = vpop.f32.mrb[0].mxu0
        %v342 = vadd.f32 0.0, %v341
        %343 = vdwg.mxu0
        %344 = vmatprep.subr.bf16.mxu0 %v289
        %345 = vmatpush1.bf16.msra.mxu0 %v286
        %346 = vmatprep.subr.bf16.mxu0 0
        %347 = vmatpush1.bf16.msra.mxu0 0
        %348 = vmatprep.subr.bf16.mxu0 0
        %349 = vmatpush1.bf16.msra.mxu0 0
        %350 = vmatprep.subr.bf16.mxu0 0
        %351 = vmatpush1.bf16.msra.mxu0 0
        %352 = vmatprep.subr.bf16.mxu0 0
        %353 = vmatpush1.bf16.msra.mxu0 0
        %354 = vmatprep.subr.bf16.mxu0 0
        %355 = vmatpush1.bf16.msra.mxu0 0
        %356 = vmatprep.subr.bf16.mxu0 0
        %357 = vmatpush1.bf16.msra.mxu0 0
        %358 = vmatprep.subr.bf16.mxu0 0
        %359 = vmatpush1.bf16.msra.mxu0 0
        %360 = vmatprep.subr.bf16.mxu0 0
        %361 = vmatpush1.bf16.msra.mxu0 0
        %362 = vmatprep.subr.bf16.mxu0 0
        %363 = vmatpush1.bf16.msra.mxu0 0
        %364 = vmatprep.subr.bf16.mxu0 0
        %365 = vmatpush1.bf16.msra.mxu0 0
        %366 = vmatprep.subr.bf16.mxu0 0
        %367 = vmatpush1.bf16.msra.mxu0 0
        %368 = vmatprep.subr.bf16.mxu0 0
        %369 = vmatpush1.bf16.msra.mxu0 0
        %370 = vmatprep.subr.bf16.mxu0 0
        %371 = vmatpush1.bf16.msra.mxu0 0
        %372 = vmatprep.subr.bf16.mxu0 0
        %373 = vmatpush1.bf16.msra.mxu0 0
        %374 = vmatprep.subr.bf16.mxu0 0
        %375 = vmatpush1.bf16.msra.mxu0 0
        %376 = vmatprep.mubr.bf16.mxu0 0
        %377 = vmatmul.mubr.bf16.gmra.mrb[0].mxu0 %v273
        %v378 = vpop.f32.mrb[0].mxu0
        %v379 = vadd.f32 0.0, %v378
        %v380 = vpop.f32.mrb[0].mxu0
        %v381 = vadd.f32 0.0, %v380
        %v382 = vpop.f32.mrb[0].mxu0
        %v383 = vadd.f32 0.0, %v382
        %v384 = vpop.f32.mrb[0].mxu0
        %v385 = vadd.f32 0.0, %v384
        %386 = vmatprep.mubr.bf16.mxu0 0
        %387 = vmatmul.mubr.bf16.gmra.mrb[0].mxu0 %v276
        %v388 = vpop.f32.mrb[0].mxu0
        %v389 = vadd.f32 0.0, %v388
        %v390 = vpop.f32.mrb[0].mxu0
        %v391 = vadd.f32 0.0, %v390
        %v392 = vpop.f32.mrb[0].mxu0
        %v393 = vadd.f32 0.0, %v392
        %v394 = vpop.f32.mrb[0].mxu0
        %v395 = vadd.f32 0.0, %v394
        %396 = vdwg.mxu0
        %v397 = vpack.c.bf16 %v330, %v326
        %v398 = vpack.c.bf16 %v332, %v328
        %v399 = vpack.c.bf16 %v383, %v379
        %v400 = vpack.c.bf16 %v385, %v381
        %v401 = vpack.c.bf16 %v340, %v336
        %v402 = vpack.c.bf16 %v342, %v338
        %v403 = vpack.c.bf16 %v393, %v389
        %v404 = vpack.c.bf16 %v395, %v391
        %v413 = vunpack.c.l.b16 %v397
        %v414 = vunpack.c.l.b16 %v398
        %v415 = vunpack.c.l.b16 %v399
        %v416 = vunpack.c.l.b16 %v400
        %v417 = vunpack.c.h.b16 %v397
        %v418 = vunpack.c.h.b16 %v398
        %v419 = vunpack.c.h.b16 %v399
        %v420 = vunpack.c.h.b16 %v400
        %v421 = vunpack.c.l.b16 %v401
        %v422 = vunpack.c.l.b16 %v402
        %v423 = vunpack.c.l.b16 %v403
        %v424 = vunpack.c.l.b16 %v404
        %v425 = vunpack.c.h.b16 %v401
        %v426 = vunpack.c.h.b16 %v402
        %v427 = vunpack.c.h.b16 %v403
        %v428 = vunpack.c.h.b16 %v404
        %v429 = vpack.c.b16 %v414, %v413
        %v430 = vpack.c.b16 %v416, %v415
        %v431 = vpack.c.b16 %v418, %v417
        %v432 = vpack.c.b16 %v420, %v419
        %v433 = vpack.c.b16 %v422, %v421
        %v434 = vpack.c.b16 %v424, %v423
        %v435 = vpack.c.b16 %v426, %v425
        %v436 = vpack.c.b16 %v428, %v427
        %445 = vst [vmem:[%s219] sm:$0xff] %v429
        %446 = vst [vmem:[%s219 + $0x8] sm:$0xff] %v430
        %447 = vst [vmem:[%s219 + $0x10] sm:$0xff] %v431
        %448 = vst [vmem:[%s219 + $0x18] sm:$0xff] %v432
        %449 = vst [vmem:[%s219 + $0x20] sm:$0xff] %v433
        %450 = vst [vmem:[%s219 + $0x28] sm:$0xff] %v434
        %451 = vst [vmem:[%s219 + $0x30] sm:$0xff] %v435
        %452 = vst [vmem:[%s219 + $0x38] sm:$0xff] %v436
        %v453 = vadd.f32 %v326, %v328
        %v454 = vadd.f32 %v453, %v379
        %v455 = vadd.f32 %v454, %v381
        %456 = vadd.xlane.f32.xlu0 %v455
        %v457 = vpop.xlane.xlu0 %456
        %v458 = vadd.f32 %v330, %v332
        %v459 = vadd.f32 %v458, %v383
        %v460 = vadd.f32 %v459, %v385
        %461 = vadd.xlane.f32.xlu0 %v460
        %v462 = vpop.xlane.xlu0 %461
        %v463 = vadd.f32 %v336, %v338
        %v464 = vadd.f32 %v463, %v389
        %v465 = vadd.f32 %v464, %v391
        %466 = vadd.xlane.f32.xlu0 %v465
        %v467 = vpop.xlane.xlu0 %466
        %v468 = vadd.f32 %v340, %v342
        %v469 = vadd.f32 %v468, %v393
        %v470 = vadd.f32 %v469, %v395
        %471 = vadd.xlane.f32.xlu0 %v470
        %v472 = vpop.xlane.xlu0 %471
        %v473 = vmul.f32 %v326, %v326
        %v474 = vmul.f32 %v328, %v328
        %v475 = vmul.f32 %v379, %v379
        %v476 = vmul.f32 %v381, %v381
        %v477 = vmul.f32 %v330, %v330
        %v478 = vmul.f32 %v332, %v332
        %v479 = vmul.f32 %v383, %v383
        %v480 = vmul.f32 %v385, %v385
        %v481 = vmul.f32 %v336, %v336
        %v482 = vmul.f32 %v338, %v338
        %v483 = vmul.f32 %v389, %v389
        %v484 = vmul.f32 %v391, %v391
        %v485 = vmul.f32 %v340, %v340
        %v486 = vmul.f32 %v342, %v342
        %v487 = vmul.f32 %v393, %v393
        %v488 = vmul.f32 %v395, %v395
        %v489 = vadd.f32 %v473, %v474
        %v490 = vadd.f32 %v489, %v475
        %v491 = vadd.f32 %v490, %v476
        %492 = vadd.xlane.f32.xlu0 %v491
        %v493 = vpop.xlane.xlu0 %492
        %v494 = vadd.f32 %v477, %v478
        %v495 = vadd.f32 %v494, %v479
        %v496 = vadd.f32 %v495, %v480
        %497 = vadd.xlane.f32.xlu0 %v496
        %v498 = vpop.xlane.xlu0 %497
        %v499 = vadd.f32 %v481, %v482
        %v500 = vadd.f32 %v499, %v483
        %v501 = vadd.f32 %v500, %v484
        %502 = vadd.xlane.f32.xlu0 %v501
        %v503 = vpop.xlane.xlu0 %502
        %v504 = vadd.f32 %v485, %v486
        %v505 = vadd.f32 %v504, %v487
        %v506 = vadd.f32 %v505, %v488
        %507 = vadd.xlane.f32.xlu0 %v506
        %v508 = vpop.xlane.xlu0 %507
        %vm509 = vcmask 7168
        %v510 = vsel %vm509, %v457, %v493
        %v511 = vsel %vm509, %v462, %v498
        %v512 = vsel %vm509, %v467, %v503
        %v513 = vsel %vm509, %v472, %v508
        %p514 = scmp.eq.s32.totalorder %s28, 0
        // Predicated region
        $region33: #{tpu_custom_call.1} parent=27 // pred_check
          %p515 = pneg %p514
        $region34: #{tpu_custom_call.1} parent=27 // pred_check_branch
          %517 = sbr.rel (%p515) target = $region36
        $region35: #{tpu_custom_call.1} parent=27 // pred_region
          %vm518 = vcmask 15360
          %519 = vst.msk [vmem:[%s243] sm:$0xff] %vm518, %v510
          %520 = vst.msk [vmem:[%s243 + $0x8] sm:$0xff] %vm518, %v511
          %521 = vst.msk [vmem:[%s243 + $0x10] sm:$0xff] %vm518, %v512
          %522 = vst.msk [vmem:[%s243 + $0x18] sm:$0xff] %vm518, %v513
        $region36: #{tpu_custom_call.1} parent=27 // pred_fallthru
          _
        %p523 = scmp.gt.s32.totalorder %s28, 0
        // Predicated region
        $region37: #{tpu_custom_call.1} parent=27 // pred_check
          %p524 = pneg %p523
        $region38: #{tpu_custom_call.1} parent=27 // pred_check_branch
          %526 = sbr.rel (%p524) target = $region40
        $region39: #{tpu_custom_call.1} parent=27 // pred_region
          %v527 = vld [vmem:[%s243] sm:$0xff]
          %v528 = vld [vmem:[%s243 + $0x8] sm:$0xff]
          %v529 = vld [vmem:[%s243 + $0x10] sm:$0xff]
          %v530 = vld [vmem:[%s243 + $0x18] sm:$0xff]
          %v531 = vadd.f32 %v527, %v510
          %v532 = vadd.f32 %v528, %v511
          %v533 = vadd.f32 %v529, %v512
          %v534 = vadd.f32 %v530, %v513
          %vm535 = vcmask 15360
          %536 = vst.msk [vmem:[%s243] sm:$0xff] %vm535, %v531
          %537 = vst.msk [vmem:[%s243 + $0x8] sm:$0xff] %vm535, %v532
          %538 = vst.msk [vmem:[%s243 + $0x10] sm:$0xff] %vm535, %v533
          %539 = vst.msk [vmem:[%s243 + $0x18] sm:$0xff] %vm535, %v534
        $region40: #{tpu_custom_call.1} parent=27 // pred_fallthru
          _
        %s540 = sand.u32 %s103, 1
        %s541 = scalar_lea.sflag [#allocation4], %s540
        %s542 = sand.u32 %s103, 1
        %s543 = smul.addr %s542, 64
        %s544 = scalar_lea.vmem [#allocation5], %s543
        %p545 = scmp.lt.s32.totalorder %s27, 1
        %s546 = scalar_select %p545, %s27, 1
        %p547 = scmp.lt.s32.totalorder %s26, 1
        %s548 = scalar_select %p547, %s26, 1
        %s549 = smul.addr %s548, 4
        %s550 = smul.addr %s546, 8
        %s551 = sadd.s32 %s549, %s550
        %s552 = smul.addr %s551, 8
        %s553 = scalar_lea.vmem %s3, %s552
        // Predicated region
        $region41: #{tpu_custom_call.1} parent=27 // pred_check
          %p554 = pneg %p113
        $region42: #{tpu_custom_call.1} parent=27 // pred_check_branch
          %556 = sbr.rel (%p554) target = $region44
        $region43: #{tpu_custom_call.1} parent=27 // pred_region
          %s557 = sadd.s32 %s26, %s28
          %s558 = smul.u32 4, %s557
          %s560 = ssub.s32 1024, 1024
          %561 = vsyncadd %s541, %s560
          %s562 = smul.addr %s27, 32
          %s563 = sadd.s32 %s558, %s562
          %s564 = smul.addr %s563, 64
          %s565 = scalar_lea.hbm %s2, %s564
          %s566 = sshll.u32 %s544, 4
          %s567 = int_to_ptr.vmem [resolvable:$true] %s566
          %572 = dma.vmem_to_hbm [thread:$0]  %s567, 1024, %s565, %s541, 256, 512, 16
        $region44: #{tpu_custom_call.1} parent=27 // pred_fallthru
          _
        // Predicated region
        $region45: #{tpu_custom_call.1} parent=27 // pred_check
          %p573 = pneg %p141
        $region46: #{tpu_custom_call.1} parent=27 // pred_check_branch
          %575 = sbr.rel (%p573) target = $region48
        $region47: #{tpu_custom_call.1} parent=27 // pred_region
          _
        $region48: #{tpu_custom_call.1} parent=27 // pred_fallthru
          _
      $region28: #{tpu_custom_call.1} parent=5 // pred_fallthru
        _
      %p576 = scmp.le.s32.totalorder 2, %s16
      // Predicated region
      $region49: #{tpu_custom_call.1} parent=5 // pred_check
        %p577 = pneg %p576
      $region50: #{tpu_custom_call.1} parent=5 // pred_check_branch
        %579 = sbr.rel (%p577) target = $region52
      $region51: #{tpu_custom_call.1} parent=5 // pred_region
        %s580 = ssub.s32 %s16, 2
        // Predicated region
        $region53: #{tpu_custom_call.1} parent=51 // pred_check
          %p581 = pneg %p119
        $region54: #{tpu_custom_call.1} parent=51 // pred_check_branch
          %583 = sbr.rel (%p581) target = $region56
        $region55: #{tpu_custom_call.1} parent=51 // pred_region
          %s584 = sand.u32 %s104, 1
          %s585 = scalar_lea.sflag [#allocation4], %s584
          %s586 = sand.u32 %s104, 1
          %s587 = smul.addr %s586, 64
          %s588 = scalar_lea.vmem [#allocation5], %s587
          %589 = dma.done %s585, 1024
        $region56: #{tpu_custom_call.1} parent=51 // pred_fallthru
          _
        // Predicated region
        $region57: #{tpu_custom_call.1} parent=51 // pred_check
          %p590 = pneg %p147
        $region58: #{tpu_custom_call.1} parent=51 // pred_check_branch
          %592 = sbr.rel (%p590) target = $region60
        $region59: #{tpu_custom_call.1} parent=51 // pred_region
          %p593 = scmp.lt.s32.totalorder %s30, 1
          %s594 = scalar_select %p593, %s30, 1
          %p595 = scmp.lt.s32.totalorder %s29, 1
          %s596 = scalar_select %p595, %s29, 1
          %s597 = smul.addr %s596, 4
          %s598 = smul.addr %s594, 8
          %s599 = sadd.s32 %s597, %s598
          %s600 = smul.addr %s599, 8
          %s601 = scalar_lea.vmem %s3, %s600
        $region60: #{tpu_custom_call.1} parent=51 // pred_fallthru
          _
      $region52: #{tpu_custom_call.1} parent=5 // pred_fallthru
        _
    $region6: #{tpu_custom_call.1} parent=1 // loop_footer
      %s20 = sadd.s32 1, %s16
    $region7: #{tpu_custom_call.1} parent=1 // loop_footer_branch
      %15 = sbr.rel target = $region3
    $region8: #{tpu_custom_call.1} parent=1 // loop_exit
      _
    %602 = vsyncpa [#allocation3], 1
    %s603 = scalar_lea.sflag [#allocation3], 1
    %604 = vsyncpa %s603, 1
    %605 = vsyncpa [#allocation4], 1
    %s606 = scalar_lea.sflag [#allocation4], 1
    %607 = vsyncpa %s606, 1

</llo_original>
